<compile_context>
chip_gen: v5e
topology: v5e:2x2
jax: 0.10.0
libtpu: 0.0.40
codegen_flags: <defaults>
</compile_context>

<pallas_src>
import math

import jax
import jax.numpy as jnp
from jax import lax
from jax.experimental import pallas as pl
from jax.experimental.pallas import tpu as pltpu


# ---------------------------------------------------------------------------
# Kernel
# ---------------------------------------------------------------------------

def _matvec_rows(w_ref, x_ref, b_ref, o_ref, start, size):
    """out[start:start+size, :] = sum_i w[start:start+size, :, i] * x[start:start+size, i] (+ b)."""
    w = w_ref[pl.ds(start, size)].astype(jnp.float32)       # (size, TO, I)
    x = x_ref[pl.ds(start, size)].astype(jnp.float32)       # (size, I)
    # VPU elementwise multiply + cross-lane reduce over I, f32 accumulation.
    acc = jnp.sum(w * x[:, None, :], axis=-1)                # (size, TO)
    if b_ref is not None:
        acc = acc + b_ref[pl.ds(start, size)].astype(jnp.float32)
    o_ref[pl.ds(start, size)] = acc.astype(o_ref.dtype)


def _tensor_linear_block(w_ref, x_ref, b_ref, o_ref):
    # Chunk over <=8 batch rows to bound live f32 intermediates (hidden VMEM pressure).
    tg = w_ref.shape[0]
    cg = min(8, tg)
    n_full = tg // cg
    rem = tg - n_full * cg

    if n_full == 1:
        _matvec_rows(w_ref, x_ref, b_ref, o_ref, 0, cg)
    elif n_full > 1:
        def body(i, carry):
            start = pl.multiple_of(i * cg, cg)
            _matvec_rows(w_ref, x_ref, b_ref, o_ref, start, cg)
            return carry
        lax.fori_loop(0, n_full, body, 0)
    if rem > 0:
        _matvec_rows(w_ref, x_ref, b_ref, o_ref, n_full * cg, rem)


def _tensor_linear_bias_kernel(w_ref, x_ref, b_ref, o_ref):
    _tensor_linear_block(w_ref, x_ref, b_ref, o_ref)


def _tensor_linear_nobias_kernel(w_ref, x_ref, o_ref):
    _tensor_linear_block(w_ref, x_ref, None, o_ref)


# ---------------------------------------------------------------------------
# Block sizing (generation-aware)
# ---------------------------------------------------------------------------

def _vmem_capacity_bytes():
    try:
        info = pltpu.get_tpu_info()
        cap = getattr(info, "vmem_capacity_bytes", None)
        if cap:
            return int(cap)
    except Exception:
        pass
    return 64 << 20  # conservative default: v7x per-TensorCore VMEM


def _choose_tiles(G, O, I, w_isz, x_isz, b_isz, o_isz):
    """Pick (TG batch rows, TO out-features) per grid step and a VMEM limit."""
    vmem_cap = _vmem_capacity_bytes()
    # Per-weight-block budget: Pallas double-buffers it, and we leave room for
    # x/bias/out buffers, f32 compute intermediates and compiler scratch.
    wblk_budget = min(vmem_cap // 4, 12 << 20)
    # Per-step target weight bytes (amortize ~0.35us/step against HBM time).
    target = min(wblk_budget, 8 << 20)
    inter_cap = 4 << 20  # soft cap on the per-chunk (<=8, TO, I) f32 intermediate

    min_rows = min(G, 8)

    # ---- O tile (I stays full; see TODO for reduction tiling) ----
    if (min_rows * O * I * w_isz <= wblk_budget
            and min_rows * O * I * 4 <= inter_cap):
        TO = O
    else:
        max_to = min(wblk_budget // max(min_rows * I * w_isz, 1),
                     inter_cap // max(min_rows * I * 4, 1))
        TO = max(128, (int(max_to) // 128) * 128)   # lane-dense stores, sublane-aligned
        TO = min(TO, O)

    # ---- TG (batch elements per step) ----
    blk_row_bytes = max(TO * I * w_isz, 1)
    tg = max(1, target // blk_row_bytes)
    if tg >= G:
        TG = G                                     # full batch dim (always legal)
    else:
        TG = min(max(8, (int(tg) // 8) * 8), G)    # multiple of 8 -> sublane aligned

    # ---- keep >=2 grid steps when cheaply possible (megacore / v7x dual-TC) ----
    if pl.cdiv(G, TG) * pl.cdiv(O, TO) < 2:
        if G > 8:
            TG = max(8, ((pl.cdiv(G, 2) + 7) // 8) * 8)
        elif TO == O and O >= 256:
            TO = max(128, ((O // 2) // 128) * 128)

    # ---- VMEM limit for this tiling ----
    blk_w = TG * TO * I * w_isz
    blk_x = TG * I * x_isz
    blk_b = TG * TO * b_isz
    blk_o = TG * TO * o_isz
    inter = 2 * min(TG, 8) * TO * I * 4            # f32 upcast + product per chunk
    needed = 2 * (blk_w + blk_x + blk_b + blk_o) + inter
    vmem_limit = int(min(int(vmem_cap * 0.9), max(needed + (8 << 20), 32 << 20)))
    return int(TG), int(TO), vmem_limit


# ---------------------------------------------------------------------------
# Forward
# ---------------------------------------------------------------------------

@jax.jit
def tensor_linear_forward(weight, bias, x):
    """weight: (*bd, O, I); bias: (*bd, O) or None; x: (*bd, I) -> out: (*bd, O)."""
    *batch_dims, out_features, in_features = weight.shape
    batch_dims = tuple(batch_dims)
    G = int(math.prod(batch_dims))
    O, I = int(out_features), int(in_features)

    w = weight.reshape(G, O, I)
    xr = x.reshape(G, I)
    b = None if bias is None else bias.reshape(G, O)
    out_dtype = jnp.result_type(weight.dtype, x.dtype)

    w_isz = jnp.dtype(weight.dtype).itemsize
    x_isz = jnp.dtype(x.dtype).itemsize
    o_isz = jnp.dtype(out_dtype).itemsize
    b_isz = 0 if bias is None else jnp.dtype(bias.dtype).itemsize

    TG, TO, vmem_limit = _choose_tiles(G, O, I, w_isz, x_isz, b_isz, o_isz)
    n_g = pl.cdiv(G, TG)
    n_o = pl.cdiv(O, TO)

    # Full-extent last-two block dims: no HBM-side padding of any operand.
    in_specs = [
        pl.BlockSpec((TG, TO, I), lambda g, o: (g, o, 0)),   # weight slab
        pl.BlockSpec((TG, I), lambda g, o: (g, 0)),          # input vectors
    ]
    inputs = [w, xr]
    if b is not None:
        in_specs.append(pl.BlockSpec((TG, TO), lambda g, o: (g, o)))
        inputs.append(b)
        kernel = _tensor_linear_bias_kernel
    else:
        kernel = _tensor_linear_nobias_kernel

    flops = 2 * G * O * I
    bytes_accessed = (G * O * I * w_isz + n_o * G * I * x_isz
                      + G * O * b_isz + G * O * o_isz)

    out = pl.pallas_call(
        kernel,
        out_shape=jax.ShapeDtypeStruct((G, O), out_dtype),
        grid_spec=pltpu.PrefetchScalarGridSpec(
            num_scalar_prefetch=0,
            grid=(n_g, n_o),
            in_specs=in_specs,
            out_specs=pl.BlockSpec((TG, TO), lambda g, o: (g, o)),
        ),
        compiler_params=pltpu.CompilerParams(
            dimension_semantics=("parallel", "parallel"),
            vmem_limit_bytes=int(vmem_limit),
        ),
        cost_estimate=pl.CostEstimate(
            flops=int(flops), transcendentals=0,
            bytes_accessed=int(bytes_accessed)),
    )(*inputs)

    return out.reshape(*batch_dims, out_features)


def init_tensor_linear_params(key, batch_dims, in_features, out_features,
                              dtype=jnp.float32):
    """Matches nn.init.kaiming_uniform_(a=sqrt(5)) + the module's bias init."""
    kw, kb = jax.random.split(key)
    bound = 1.0 / math.sqrt(in_features)   # kaiming_uniform with a=sqrt(5)
    weight = jax.random.uniform(
        kw, (*batch_dims, out_features, in_features), dtype=dtype,
        minval=-bound, maxval=bound)
    bias = jax.random.uniform(
        kb, (*batch_dims, out_features), dtype=dtype,
        minval=-bound, maxval=bound)
    return weight, bias


if __name__ == "__main__":
    key = jax.random.PRNGKey(0)
    k_param, k_x = jax.random.split(key)

    batch_dims = (2, 3)
    in_features = 32
    out_features = 64

    weight, bias = init_tensor_linear_params(
        k_param, batch_dims, in_features, out_features)
    x = jax.random.normal(k_x, (*batch_dims, in_features), dtype=jnp.float32)

    # With bias (module default).
    out = jax.block_until_ready(tensor_linear_forward(weight, bias, x))
    ref = jnp.einsum("...oi,...i->...o", weight, x) + bias
    assert out.shape == (*batch_dims, out_features)
    assert jnp.allclose(out, ref, atol=1e-5, rtol=1e-5)

    # bias=False variant (no zero-bias array is synthesized or DMA'd).
    out_nb = jax.block_until_ready(tensor_linear_forward(weight, None, x))
    ref_nb = jnp.einsum("...oi,...i->...o", weight, x)
    assert jnp.allclose(out_nb, ref_nb, atol=1e-5, rtol=1e-5)

    print("KERNEL_OK")
</pallas_src>

<mosaic_0001>
module attributes {stable_mosaic.version = 11 : i64} {
  func.func @_tensor_linear_bias_kernel(%arg0: i32, %arg1: i32, %arg2: memref<6x64x32xf32, #tpu.memory_space<vmem>>, %arg3: memref<6x32xf32, #tpu.memory_space<vmem>>, %arg4: memref<6x64xf32, #tpu.memory_space<vmem>>, %arg5: memref<6x64xf32, #tpu.memory_space<vmem>>) attributes {dimension_semantics = [#tpu.dimension_semantics<parallel>, #tpu.dimension_semantics<parallel>], iteration_bounds = array<i64: 1, 1>, scalar_prefetch = 0 : i64, scratch_operands = 0 : i64, tpu.core_type = #tpu.core_type<tc>, window_params = [{transform_indices = @transform_0, window_bounds = array<i64: 6, 64, 32>}, {transform_indices = @transform_1, window_bounds = array<i64: 6, 32>}, {transform_indices = @transform_2, window_bounds = array<i64: 6, 64>}, {transform_indices = @transform_3, window_bounds = array<i64: 6, 64>}]} {
    %c0 = arith.constant 0 : index
    %c0_0 = arith.constant 0 : index
    %c0_1 = arith.constant 0 : index
    %0 = vector.load %arg2[%c0, %c0_0, %c0_1] : memref<6x64x32xf32, #tpu.memory_space<vmem>>, vector<6x64x32xf32>
    %c0_2 = arith.constant 0 : index
    %c0_3 = arith.constant 0 : index
    %1 = vector.load %arg3[%c0_2, %c0_3] : memref<6x32xf32, #tpu.memory_space<vmem>>, vector<6x32xf32>
    %2 = vector.shape_cast %1 : vector<6x32xf32> to vector<6x1x32xf32>
    %3 = vector.broadcast %2 : vector<6x1x32xf32> to vector<6x64x32xf32>
    %4 = arith.mulf %0, %3 : vector<6x64x32xf32>
    %cst = arith.constant dense<0.000000e+00> : vector<6x64xf32>
    %5 = vector.multi_reduction <add>, %4, %cst [2] : vector<6x64x32xf32> to vector<6x64xf32>
    %c0_4 = arith.constant 0 : index
    %c0_5 = arith.constant 0 : index
    %6 = vector.load %arg4[%c0_4, %c0_5] : memref<6x64xf32, #tpu.memory_space<vmem>>, vector<6x64xf32>
    %7 = arith.addf %5, %6 : vector<6x64xf32>
    %c0_6 = arith.constant 0 : index
    %c0_7 = arith.constant 0 : index
    %8 = vector.load %arg5[%c0_6, %c0_7] : memref<6x64xf32, #tpu.memory_space<vmem>>, vector<6x64xf32>
    tpu.vector_store %arg5[%c0_6, %c0_7], %7 {strides = array<i32>} : memref<6x64xf32, #tpu.memory_space<vmem>>, vector<6x64xf32>,
    return
  }
  func.func @transform_0(%arg0: i32, %arg1: i32) -> (i32, i32, i32) {
    %c0_i32 = arith.constant 0 : i32
    %c0_i32_0 = arith.constant 0 : i32
    return %arg0, %arg1, %c0_i32 : i32, i32, i32
  }
  func.func @transform_1(%arg0: i32, %arg1: i32) -> (i32, i32) {
    %c0_i32 = arith.constant 0 : i32
    %c0_i32_0 = arith.constant 0 : i32
    return %arg0, %c0_i32 : i32, i32
  }
  func.func @transform_2(%arg0: i32, %arg1: i32) -> (i32, i32) {
    %c0_i32 = arith.constant 0 : i32
    return %arg0, %arg1 : i32, i32
  }
  func.func @transform_3(%arg0: i32, %arg1: i32) -> (i32, i32) {
    %c0_i32 = arith.constant 0 : i32
    return %arg0, %arg1 : i32, i32
  }
}

</mosaic_0001>

<llo_original>
// kernel: tensor_linear_forward.1
$region0: #{tensor_linear_forward.1}
  #allocation0 [shape = 'u32[]', space=smem, size = 0x4, offset = 0x4, fixed_abs, tag = 'smem constant byte address 0x4 - core index']
  #allocation1 [shape = 'u32[72,128]{1,0:T(1,128)}', space=vmem, size = 0x9000, scoped, tag = 'internal scratch']
  %s0 = inlined_call_operand.vmem [shape: f32[6,64,32], index: 0, kind: input, shape index: {}]
  %s1 = inlined_call_operand.vmem [shape: f32[6,32], index: 1, kind: input, shape index: {}]
  %s2 = inlined_call_operand.vmem [shape: f32[6,64], index: 2, kind: input, shape index: {}]
  %s3 = inlined_call_operand.vmem [shape: f32[6,64], index: 3, kind: output, shape index: {}]
  %s4 = sld [smem:[#allocation0]]
  $region22: #{tensor_linear_forward.1} parent=0
    _
  %s6 = ssub.s32 1, %s4
  %s7 = scalar_select 0, %s6, %s4
  // Predicated region
  $region2: #{tensor_linear_forward.1} parent=0 // pred_check
    _
  $region3: #{tensor_linear_forward.1} parent=0 // pred_check_branch
    %9 = sbr.rel (0) target = $region5
  $region4: #{tensor_linear_forward.1} parent=0 // pred_region
    _
  $region5: #{tensor_linear_forward.1} parent=0 // pred_fallthru
    _
  // Predicated region
  $region6: #{tensor_linear_forward.1} parent=0 // pred_check
    _
  $region7: #{tensor_linear_forward.1} parent=0 // pred_check_branch
    %11 = sbr.rel (0) target = $region9
  $region8: #{tensor_linear_forward.1} parent=0 // pred_region
    _
  $region9: #{tensor_linear_forward.1} parent=0 // pred_fallthru
    _
  // Predicated region
  $region10: #{tensor_linear_forward.1} parent=0 // pred_check
    _
  $region11: #{tensor_linear_forward.1} parent=0 // pred_check_branch
    %13 = sbr.rel (0) target = $region13
  $region12: #{tensor_linear_forward.1} parent=0 // pred_region
    _
  $region13: #{tensor_linear_forward.1} parent=0 // pred_fallthru
    _
  %v14 = vld [vmem:[%s0] sm:$0xff]
  %v15 = vld [vmem:[%s0 + $0x8] sm:$0xff]
  %v16 = vld [vmem:[%s0 + $0x10] sm:$0xff]
  %v17 = vld [vmem:[%s0 + $0x18] sm:$0xff]
  %v18 = vld [vmem:[%s0 + $0x20] sm:$0xff]
  %v19 = vld [vmem:[%s0 + $0x28] sm:$0xff]
  %v20 = vld [vmem:[%s0 + $0x30] sm:$0xff]
  %v21 = vld [vmem:[%s0 + $0x38] sm:$0xff]
  %v22 = vld [vmem:[%s0 + $0x40] sm:$0xff]
  %v23 = vld [vmem:[%s0 + $0x48] sm:$0xff]
  %v24 = vld [vmem:[%s0 + $0x50] sm:$0xff]
  %v25 = vld [vmem:[%s0 + $0x58] sm:$0xff]
  %v26 = vld [vmem:[%s0 + $0x60] sm:$0xff]
  %v27 = vld [vmem:[%s0 + $0x68] sm:$0xff]
  %v28 = vld [vmem:[%s0 + $0x70] sm:$0xff]
  %v29 = vld [vmem:[%s0 + $0x78] sm:$0xff]
  %v30 = vld [vmem:[%s0 + $0x80] sm:$0xff]
  %v31 = vld [vmem:[%s0 + $0x88] sm:$0xff]
  %v32 = vld [vmem:[%s0 + $0x90] sm:$0xff]
  %v33 = vld [vmem:[%s0 + $0x98] sm:$0xff]
  %v34 = vld [vmem:[%s0 + $0xa0] sm:$0xff]
  %v35 = vld [vmem:[%s0 + $0xa8] sm:$0xff]
  %v36 = vld [vmem:[%s0 + $0xb0] sm:$0xff]
  %v37 = vld [vmem:[%s0 + $0xb8] sm:$0xff]
  %v38 = vld [vmem:[%s0 + $0xc0] sm:$0xff]
  %v39 = vld [vmem:[%s0 + $0xc8] sm:$0xff]
  %v40 = vld [vmem:[%s0 + $0xd0] sm:$0xff]
  %v41 = vld [vmem:[%s0 + $0xd8] sm:$0xff]
  %v42 = vld [vmem:[%s0 + $0xe0] sm:$0xff]
  %v43 = vld [vmem:[%s0 + $0xe8] sm:$0xff]
  %v44 = vld [vmem:[%s0 + $0xf0] sm:$0xff]
  %v45 = vld [vmem:[%s0 + $0xf8] sm:$0xff]
  %v46 = vld [vmem:[%s0 + $0x100] sm:$0xff]
  %v47 = vld [vmem:[%s0 + $0x108] sm:$0xff]
  %v48 = vld [vmem:[%s0 + $0x110] sm:$0xff]
  %v49 = vld [vmem:[%s0 + $0x118] sm:$0xff]
  %v50 = vld [vmem:[%s0 + $0x120] sm:$0xff]
  %v51 = vld [vmem:[%s0 + $0x128] sm:$0xff]
  %v52 = vld [vmem:[%s0 + $0x130] sm:$0xff]
  %v53 = vld [vmem:[%s0 + $0x138] sm:$0xff]
  %v54 = vld [vmem:[%s0 + $0x140] sm:$0xff]
  %v55 = vld [vmem:[%s0 + $0x148] sm:$0xff]
  %v56 = vld [vmem:[%s0 + $0x150] sm:$0xff]
  %v57 = vld [vmem:[%s0 + $0x158] sm:$0xff]
  %v58 = vld [vmem:[%s0 + $0x160] sm:$0xff]
  %v59 = vld [vmem:[%s0 + $0x168] sm:$0xff]
  %v60 = vld [vmem:[%s0 + $0x170] sm:$0xff]
  %v61 = vld [vmem:[%s0 + $0x178] sm:$0xff]
  %v62 = vld [vmem:[%s1] sm:$0x3f]
  %v64 = vrot.slane %v62, 1
  %v65 = vrot.slane %v62, 2
  %v66 = vrot.slane %v62, 3
  %v67 = vrot.slane %v62, 4
  %v68 = vrot.slane %v62, 5
  %v69 = vperm.slane %v62, 0
  %v70 = vperm.slane %v64, 0
  %v71 = vperm.slane %v65, 0
  %v72 = vperm.slane %v66, 0
  %v73 = vperm.slane %v67, 0
  %v74 = vperm.slane %v68, 0
  %v81 = vmul.f32 %v14, %v69
  %v82 = vmul.f32 %v15, %v69
  %v83 = vmul.f32 %v16, %v69
  %v84 = vmul.f32 %v17, %v69
  %v85 = vmul.f32 %v18, %v69
  %v86 = vmul.f32 %v19, %v69
  %v87 = vmul.f32 %v20, %v69
  %v88 = vmul.f32 %v21, %v69
  %v89 = vmul.f32 %v22, %v70
  %v90 = vmul.f32 %v23, %v70
  %v91 = vmul.f32 %v24, %v70
  %v92 = vmul.f32 %v25, %v70
  %v93 = vmul.f32 %v26, %v70
  %v94 = vmul.f32 %v27, %v70
  %v95 = vmul.f32 %v28, %v70
  %v96 = vmul.f32 %v29, %v70
  %v97 = vmul.f32 %v30, %v71
  %v98 = vmul.f32 %v31, %v71
  %v99 = vmul.f32 %v32, %v71
  %v100 = vmul.f32 %v33, %v71
  %v101 = vmul.f32 %v34, %v71
  %v102 = vmul.f32 %v35, %v71
  %v103 = vmul.f32 %v36, %v71
  %v104 = vmul.f32 %v37, %v71
  %v105 = vmul.f32 %v38, %v72
  %v106 = vmul.f32 %v39, %v72
  %v107 = vmul.f32 %v40, %v72
  %v108 = vmul.f32 %v41, %v72
  %v109 = vmul.f32 %v42, %v72
  %v110 = vmul.f32 %v43, %v72
  %v111 = vmul.f32 %v44, %v72
  %v112 = vmul.f32 %v45, %v72
  %v113 = vmul.f32 %v46, %v73
  %v114 = vmul.f32 %v47, %v73
  %v115 = vmul.f32 %v48, %v73
  %v116 = vmul.f32 %v49, %v73
  %v117 = vmul.f32 %v50, %v73
  %v118 = vmul.f32 %v51, %v73
  %v119 = vmul.f32 %v52, %v73
  %v120 = vmul.f32 %v53, %v73
  %v121 = vmul.f32 %v54, %v74
  %v122 = vmul.f32 %v55, %v74
  %v123 = vmul.f32 %v56, %v74
  %v124 = vmul.f32 %v57, %v74
  %v125 = vmul.f32 %v58, %v74
  %v126 = vmul.f32 %v59, %v74
  %v127 = vmul.f32 %v60, %v74
  %v128 = vmul.f32 %v61, %v74
  %vm129 = vcmask 261120
  %v130 = vsel %vm129, %v81, 0.0
  %131 = vadd.xlane.f32.xlu0 %v130
  %v132 = vpop.xlane.xlu0 %131
  %v133 = vsel %vm129, %v82, 0.0
  %134 = vadd.xlane.f32.xlu0 %v133
  %v135 = vpop.xlane.xlu0 %134
  %v136 = vsel %vm129, %v83, 0.0
  %137 = vadd.xlane.f32.xlu0 %v136
  %v138 = vpop.xlane.xlu0 %137
  %v139 = vsel %vm129, %v84, 0.0
  %140 = vadd.xlane.f32.xlu0 %v139
  %v141 = vpop.xlane.xlu0 %140
  %v142 = vsel %vm129, %v85, 0.0
  %143 = vadd.xlane.f32.xlu0 %v142
  %v144 = vpop.xlane.xlu0 %143
  %v145 = vsel %vm129, %v86, 0.0
  %146 = vadd.xlane.f32.xlu0 %v145
  %v147 = vpop.xlane.xlu0 %146
  %v148 = vsel %vm129, %v87, 0.0
  %149 = vadd.xlane.f32.xlu0 %v148
  %v150 = vpop.xlane.xlu0 %149
  %v151 = vsel %vm129, %v88, 0.0
  %152 = vadd.xlane.f32.xlu0 %v151
  %v153 = vpop.xlane.xlu0 %152
  %v154 = vsel %vm129, %v89, 0.0
  %155 = vadd.xlane.f32.xlu0 %v154
  %v156 = vpop.xlane.xlu0 %155
  %v157 = vsel %vm129, %v90, 0.0
  %158 = vadd.xlane.f32.xlu0 %v157
  %v159 = vpop.xlane.xlu0 %158
  %v160 = vsel %vm129, %v91, 0.0
  %161 = vadd.xlane.f32.xlu0 %v160
  %v162 = vpop.xlane.xlu0 %161
  %v163 = vsel %vm129, %v92, 0.0
  %164 = vadd.xlane.f32.xlu0 %v163
  %v165 = vpop.xlane.xlu0 %164
  %v166 = vsel %vm129, %v93, 0.0
  %167 = vadd.xlane.f32.xlu0 %v166
  %v168 = vpop.xlane.xlu0 %167
  %v169 = vsel %vm129, %v94, 0.0
  %170 = vadd.xlane.f32.xlu0 %v169
  %v171 = vpop.xlane.xlu0 %170
  %v172 = vsel %vm129, %v95, 0.0
  %173 = vadd.xlane.f32.xlu0 %v172
  %v174 = vpop.xlane.xlu0 %173
  %v175 = vsel %vm129, %v96, 0.0
  %176 = vadd.xlane.f32.xlu0 %v175
  %v177 = vpop.xlane.xlu0 %176
  %v178 = vsel %vm129, %v97, 0.0
  %179 = vadd.xlane.f32.xlu0 %v178
  %v180 = vpop.xlane.xlu0 %179
  %v181 = vsel %vm129, %v98, 0.0
  %182 = vadd.xlane.f32.xlu0 %v181
  %v183 = vpop.xlane.xlu0 %182
  %v184 = vsel %vm129, %v99, 0.0
  %185 = vadd.xlane.f32.xlu0 %v184
  %v186 = vpop.xlane.xlu0 %185
  %v187 = vsel %vm129, %v100, 0.0
  %188 = vadd.xlane.f32.xlu0 %v187
  %v189 = vpop.xlane.xlu0 %188
  %v190 = vsel %vm129, %v101, 0.0
  %191 = vadd.xlane.f32.xlu0 %v190
  %v192 = vpop.xlane.xlu0 %191
  %v193 = vsel %vm129, %v102, 0.0
  %194 = vadd.xlane.f32.xlu0 %v193
  %v195 = vpop.xlane.xlu0 %194
  %v196 = vsel %vm129, %v103, 0.0
  %197 = vadd.xlane.f32.xlu0 %v196
  %v198 = vpop.xlane.xlu0 %197
  %v199 = vsel %vm129, %v104, 0.0
  %200 = vadd.xlane.f32.xlu0 %v199
  %v201 = vpop.xlane.xlu0 %200
  %v202 = vsel %vm129, %v105, 0.0
  %203 = vadd.xlane.f32.xlu0 %v202
  %v204 = vpop.xlane.xlu0 %203
  %v205 = vsel %vm129, %v106, 0.0
  %206 = vadd.xlane.f32.xlu0 %v205
  %v207 = vpop.xlane.xlu0 %206
  %v208 = vsel %vm129, %v107, 0.0
  %209 = vadd.xlane.f32.xlu0 %v208
  %v210 = vpop.xlane.xlu0 %209
  %v211 = vsel %vm129, %v108, 0.0
  %212 = vadd.xlane.f32.xlu0 %v211
  %v213 = vpop.xlane.xlu0 %212
  %v214 = vsel %vm129, %v109, 0.0
  %215 = vadd.xlane.f32.xlu0 %v214
  %v216 = vpop.xlane.xlu0 %215
  %v217 = vsel %vm129, %v110, 0.0
  %218 = vadd.xlane.f32.xlu0 %v217
  %v219 = vpop.xlane.xlu0 %218
  %v220 = vsel %vm129, %v111, 0.0
  %221 = vadd.xlane.f32.xlu0 %v220
  %v222 = vpop.xlane.xlu0 %221
  %v223 = vsel %vm129, %v112, 0.0
  %224 = vadd.xlane.f32.xlu0 %v223
  %v225 = vpop.xlane.xlu0 %224
  %v226 = vsel %vm129, %v113, 0.0
  %227 = vadd.xlane.f32.xlu0 %v226
  %v228 = vpop.xlane.xlu0 %227
  %v229 = vsel %vm129, %v114, 0.0
  %230 = vadd.xlane.f32.xlu0 %v229
  %v231 = vpop.xlane.xlu0 %230
  %v232 = vsel %vm129, %v115, 0.0
  %233 = vadd.xlane.f32.xlu0 %v232
  %v234 = vpop.xlane.xlu0 %233
  %v235 = vsel %vm129, %v116, 0.0
  %236 = vadd.xlane.f32.xlu0 %v235
  %v237 = vpop.xlane.xlu0 %236
  %v238 = vsel %vm129, %v117, 0.0
  %239 = vadd.xlane.f32.xlu0 %v238
  %v240 = vpop.xlane.xlu0 %239
  %v241 = vsel %vm129, %v118, 0.0
  %242 = vadd.xlane.f32.xlu0 %v241
  %v243 = vpop.xlane.xlu0 %242
  %v244 = vsel %vm129, %v119, 0.0
  %245 = vadd.xlane.f32.xlu0 %v244
  %v246 = vpop.xlane.xlu0 %245
  %v247 = vsel %vm129, %v120, 0.0
  %248 = vadd.xlane.f32.xlu0 %v247
  %v249 = vpop.xlane.xlu0 %248
  %v250 = vsel %vm129, %v121, 0.0
  %251 = vadd.xlane.f32.xlu0 %v250
  %v252 = vpop.xlane.xlu0 %251
  %v253 = vsel %vm129, %v122, 0.0
  %254 = vadd.xlane.f32.xlu0 %v253
  %v255 = vpop.xlane.xlu0 %254
  %v256 = vsel %vm129, %v123, 0.0
  %257 = vadd.xlane.f32.xlu0 %v256
  %v258 = vpop.xlane.xlu0 %257
  %v259 = vsel %vm129, %v124, 0.0
  %260 = vadd.xlane.f32.xlu0 %v259
  %v261 = vpop.xlane.xlu0 %260
  %v262 = vsel %vm129, %v125, 0.0
  %263 = vadd.xlane.f32.xlu0 %v262
  %v264 = vpop.xlane.xlu0 %263
  %v265 = vsel %vm129, %v126, 0.0
  %266 = vadd.xlane.f32.xlu0 %v265
  %v267 = vpop.xlane.xlu0 %266
  %v268 = vsel %vm129, %v127, 0.0
  %269 = vadd.xlane.f32.xlu0 %v268
  %v270 = vpop.xlane.xlu0 %269
  %v271 = vsel %vm129, %v128, 0.0
  %272 = vadd.xlane.f32.xlu0 %v271
  %v273 = vpop.xlane.xlu0 %272
  %v274 = vld [vmem:[%s2] sm:$0x3f]
  %v276 = vperm.slane %v274, 0
  %v277 = vlaneseq
  %v278 = vshrl.u32 %v277, 7
  %280 = vset.pattern.permute.xlu0 %v278
  %281 = vperm.xlu0 %280, %v276
  %v282 = vpop.permute.xlu0 %281
  %v283 = vlaneseq
  %v284 = vshrl.u32 %v283, 7
  %v285 = vadd.s32 %v284, 8
  %286 = vset.pattern.permute.xlu0 %v285
  %287 = vperm.xlu0 %286, %v276
  %v288 = vpop.permute.xlu0 %287
  %v289 = vlaneseq
  %v290 = vshrl.u32 %v289, 7
  %v291 = vadd.s32 %v290, 16
  %292 = vset.pattern.permute.xlu0 %v291
  %293 = vperm.xlu0 %292, %v276
  %v294 = vpop.permute.xlu0 %293
  %v295 = vlaneseq
  %v296 = vshrl.u32 %v295, 7
  %v297 = vadd.s32 %v296, 24
  %298 = vset.pattern.permute.xlu0 %v297
  %299 = vperm.xlu0 %298, %v276
  %v300 = vpop.permute.xlu0 %299
  %v301 = vlaneseq
  %v302 = vshrl.u32 %v301, 7
  %v303 = vadd.s32 %v302, 32
  %304 = vset.pattern.permute.xlu0 %v303
  %305 = vperm.xlu0 %304, %v276
  %v306 = vpop.permute.xlu0 %305
  %v307 = vlaneseq
  %v308 = vshrl.u32 %v307, 7
  %v309 = vadd.s32 %v308, 40
  %310 = vset.pattern.permute.xlu0 %v309
  %311 = vperm.xlu0 %310, %v276
  %v312 = vpop.permute.xlu0 %311
  %v313 = vlaneseq
  %v314 = vshrl.u32 %v313, 7
  %v315 = vadd.s32 %v314, 48
  %316 = vset.pattern.permute.xlu0 %v315
  %317 = vperm.xlu0 %316, %v276
  %v318 = vpop.permute.xlu0 %317
  %v319 = vlaneseq
  %v320 = vshrl.u32 %v319, 7
  %v321 = vadd.s32 %v320, 56
  %322 = vset.pattern.permute.xlu0 %v321
  %323 = vperm.xlu0 %322, %v276
  %v324 = vpop.permute.xlu0 %323
  %v325 = vperm.slane %v274, 1
  %v326 = vlaneseq
  %v327 = vshrl.u32 %v326, 7
  %329 = vset.pattern.permute.xlu0 %v327
  %330 = vperm.xlu0 %329, %v325
  %v331 = vpop.permute.xlu0 %330
  %v332 = vlaneseq
  %v333 = vshrl.u32 %v332, 7
  %v334 = vadd.s32 %v333, 8
  %335 = vset.pattern.permute.xlu0 %v334
  %336 = vperm.xlu0 %335, %v325
  %v337 = vpop.permute.xlu0 %336
  %v338 = vlaneseq
  %v339 = vshrl.u32 %v338, 7
  %v340 = vadd.s32 %v339, 16
  %341 = vset.pattern.permute.xlu0 %v340
  %342 = vperm.xlu0 %341, %v325
  %v343 = vpop.permute.xlu0 %342
  %v344 = vlaneseq
  %v345 = vshrl.u32 %v344, 7
  %v346 = vadd.s32 %v345, 24
  %347 = vset.pattern.permute.xlu0 %v346
  %348 = vperm.xlu0 %347, %v325
  %v349 = vpop.permute.xlu0 %348
  %v350 = vlaneseq
  %v351 = vshrl.u32 %v350, 7
  %v352 = vadd.s32 %v351, 32
  %353 = vset.pattern.permute.xlu0 %v352
  %354 = vperm.xlu0 %353, %v325
  %v355 = vpop.permute.xlu0 %354
  %v356 = vlaneseq
  %v357 = vshrl.u32 %v356, 7
  %v358 = vadd.s32 %v357, 40
  %359 = vset.pattern.permute.xlu0 %v358
  %360 = vperm.xlu0 %359, %v325
  %v361 = vpop.permute.xlu0 %360
  %v362 = vlaneseq
  %v363 = vshrl.u32 %v362, 7
  %v364 = vadd.s32 %v363, 48
  %365 = vset.pattern.permute.xlu0 %v364
  %366 = vperm.xlu0 %365, %v325
  %v367 = vpop.permute.xlu0 %366
  %v368 = vlaneseq
  %v369 = vshrl.u32 %v368, 7
  %v370 = vadd.s32 %v369, 56
  %371 = vset.pattern.permute.xlu0 %v370
  %372 = vperm.xlu0 %371, %v325
  %v373 = vpop.permute.xlu0 %372
  %v374 = vperm.slane %v274, 2
  %v375 = vlaneseq
  %v376 = vshrl.u32 %v375, 7
  %378 = vset.pattern.permute.xlu0 %v376
  %379 = vperm.xlu0 %378, %v374
  %v380 = vpop.permute.xlu0 %379
  %v381 = vlaneseq
  %v382 = vshrl.u32 %v381, 7
  %v383 = vadd.s32 %v382, 8
  %384 = vset.pattern.permute.xlu0 %v383
  %385 = vperm.xlu0 %384, %v374
  %v386 = vpop.permute.xlu0 %385
  %v387 = vlaneseq
  %v388 = vshrl.u32 %v387, 7
  %v389 = vadd.s32 %v388, 16
  %390 = vset.pattern.permute.xlu0 %v389
  %391 = vperm.xlu0 %390, %v374
  %v392 = vpop.permute.xlu0 %391
  %v393 = vlaneseq
  %v394 = vshrl.u32 %v393, 7
  %v395 = vadd.s32 %v394, 24
  %396 = vset.pattern.permute.xlu0 %v395
  %397 = vperm.xlu0 %396, %v374
  %v398 = vpop.permute.xlu0 %397
  %v399 = vlaneseq
  %v400 = vshrl.u32 %v399, 7
  %v401 = vadd.s32 %v400, 32
  %402 = vset.pattern.permute.xlu0 %v401
  %403 = vperm.xlu0 %402, %v374
  %v404 = vpop.permute.xlu0 %403
  %v405 = vlaneseq
  %v406 = vshrl.u32 %v405, 7
  %v407 = vadd.s32 %v406, 40
  %408 = vset.pattern.permute.xlu0 %v407
  %409 = vperm.xlu0 %408, %v374
  %v410 = vpop.permute.xlu0 %409
  %v411 = vlaneseq
  %v412 = vshrl.u32 %v411, 7
  %v413 = vadd.s32 %v412, 48
  %414 = vset.pattern.permute.xlu0 %v413
  %415 = vperm.xlu0 %414, %v374
  %v416 = vpop.permute.xlu0 %415
  %v417 = vlaneseq
  %v418 = vshrl.u32 %v417, 7
  %v419 = vadd.s32 %v418, 56
  %420 = vset.pattern.permute.xlu0 %v419
  %421 = vperm.xlu0 %420, %v374
  %v422 = vpop.permute.xlu0 %421
  %v423 = vperm.slane %v274, 3
  %v424 = vlaneseq
  %v425 = vshrl.u32 %v424, 7
  %427 = vset.pattern.permute.xlu0 %v425
  %428 = vperm.xlu0 %427, %v423
  %v429 = vpop.permute.xlu0 %428
  %v430 = vlaneseq
  %v431 = vshrl.u32 %v430, 7
  %v432 = vadd.s32 %v431, 8
  %433 = vset.pattern.permute.xlu0 %v432
  %434 = vperm.xlu0 %433, %v423
  %v435 = vpop.permute.xlu0 %434
  %v436 = vlaneseq
  %v437 = vshrl.u32 %v436, 7
  %v438 = vadd.s32 %v437, 16
  %439 = vset.pattern.permute.xlu0 %v438
  %440 = vperm.xlu0 %439, %v423
  %v441 = vpop.permute.xlu0 %440
  %v442 = vlaneseq
  %v443 = vshrl.u32 %v442, 7
  %v444 = vadd.s32 %v443, 24
  %445 = vset.pattern.permute.xlu0 %v444
  %446 = vperm.xlu0 %445, %v423
  %v447 = vpop.permute.xlu0 %446
  %v448 = vlaneseq
  %v449 = vshrl.u32 %v448, 7
  %v450 = vadd.s32 %v449, 32
  %451 = vset.pattern.permute.xlu0 %v450
  %452 = vperm.xlu0 %451, %v423
  %v453 = vpop.permute.xlu0 %452
  %v454 = vlaneseq
  %v455 = vshrl.u32 %v454, 7
  %v456 = vadd.s32 %v455, 40
  %457 = vset.pattern.permute.xlu0 %v456
  %458 = vperm.xlu0 %457, %v423
  %v459 = vpop.permute.xlu0 %458
  %v460 = vlaneseq
  %v461 = vshrl.u32 %v460, 7
  %v462 = vadd.s32 %v461, 48
  %463 = vset.pattern.permute.xlu0 %v462
  %464 = vperm.xlu0 %463, %v423
  %v465 = vpop.permute.xlu0 %464
  %v466 = vlaneseq
  %v467 = vshrl.u32 %v466, 7
  %v468 = vadd.s32 %v467, 56
  %469 = vset.pattern.permute.xlu0 %v468
  %470 = vperm.xlu0 %469, %v423
  %v471 = vpop.permute.xlu0 %470
  %v472 = vperm.slane %v274, 4
  %v473 = vlaneseq
  %v474 = vshrl.u32 %v473, 7
  %476 = vset.pattern.permute.xlu0 %v474
  %477 = vperm.xlu0 %476, %v472
  %v478 = vpop.permute.xlu0 %477
  %v479 = vlaneseq
  %v480 = vshrl.u32 %v479, 7
  %v481 = vadd.s32 %v480, 8
  %482 = vset.pattern.permute.xlu0 %v481
  %483 = vperm.xlu0 %482, %v472
  %v484 = vpop.permute.xlu0 %483
  %v485 = vlaneseq
  %v486 = vshrl.u32 %v485, 7
  %v487 = vadd.s32 %v486, 16
  %488 = vset.pattern.permute.xlu0 %v487
  %489 = vperm.xlu0 %488, %v472
  %v490 = vpop.permute.xlu0 %489
  %v491 = vlaneseq
  %v492 = vshrl.u32 %v491, 7
  %v493 = vadd.s32 %v492, 24
  %494 = vset.pattern.permute.xlu0 %v493
  %495 = vperm.xlu0 %494, %v472
  %v496 = vpop.permute.xlu0 %495
  %v497 = vlaneseq
  %v498 = vshrl.u32 %v497, 7
  %v499 = vadd.s32 %v498, 32
  %500 = vset.pattern.permute.xlu0 %v499
  %501 = vperm.xlu0 %500, %v472
  %v502 = vpop.permute.xlu0 %501
  %v503 = vlaneseq
  %v504 = vshrl.u32 %v503, 7
  %v505 = vadd.s32 %v504, 40
  %506 = vset.pattern.permute.xlu0 %v505
  %507 = vperm.xlu0 %506, %v472
  %v508 = vpop.permute.xlu0 %507
  %v509 = vlaneseq
  %v510 = vshrl.u32 %v509, 7
  %v511 = vadd.s32 %v510, 48
  %512 = vset.pattern.permute.xlu0 %v511
  %513 = vperm.xlu0 %512, %v472
  %v514 = vpop.permute.xlu0 %513
  %v515 = vlaneseq
  %v516 = vshrl.u32 %v515, 7
  %v517 = vadd.s32 %v516, 56
  %518 = vset.pattern.permute.xlu0 %v517
  %519 = vperm.xlu0 %518, %v472
  %v520 = vpop.permute.xlu0 %519
  %v521 = vperm.slane %v274, 5
  %v522 = vlaneseq
  %v523 = vshrl.u32 %v522, 7
  %525 = vset.pattern.permute.xlu0 %v523
  %526 = vperm.xlu0 %525, %v521
  %v527 = vpop.permute.xlu0 %526
  %v528 = vlaneseq
  %v529 = vshrl.u32 %v528, 7
  %v530 = vadd.s32 %v529, 8
  %531 = vset.pattern.permute.xlu0 %v530
  %532 = vperm.xlu0 %531, %v521
  %v533 = vpop.permute.xlu0 %532
  %v534 = vlaneseq
  %v535 = vshrl.u32 %v534, 7
  %v536 = vadd.s32 %v535, 16
  %537 = vset.pattern.permute.xlu0 %v536
  %538 = vperm.xlu0 %537, %v521
  %v539 = vpop.permute.xlu0 %538
  %v540 = vlaneseq
  %v541 = vshrl.u32 %v540, 7
  %v542 = vadd.s32 %v541, 24
  %543 = vset.pattern.permute.xlu0 %v542
  %544 = vperm.xlu0 %543, %v521
  %v545 = vpop.permute.xlu0 %544
  %v546 = vlaneseq
  %v547 = vshrl.u32 %v546, 7
  %v548 = vadd.s32 %v547, 32
  %549 = vset.pattern.permute.xlu0 %v548
  %550 = vperm.xlu0 %549, %v521
  %v551 = vpop.permute.xlu0 %550
  %v552 = vlaneseq
  %v553 = vshrl.u32 %v552, 7
  %v554 = vadd.s32 %v553, 40
  %555 = vset.pattern.permute.xlu0 %v554
  %556 = vperm.xlu0 %555, %v521
  %v557 = vpop.permute.xlu0 %556
  %v558 = vlaneseq
  %v559 = vshrl.u32 %v558, 7
  %v560 = vadd.s32 %v559, 48
  %561 = vset.pattern.permute.xlu0 %v560
  %562 = vperm.xlu0 %561, %v521
  %v563 = vpop.permute.xlu0 %562
  %v564 = vlaneseq
  %v565 = vshrl.u32 %v564, 7
  %v566 = vadd.s32 %v565, 56
  %567 = vset.pattern.permute.xlu0 %v566
  %568 = vperm.xlu0 %567, %v521
  %v569 = vpop.permute.xlu0 %568
  %v618 = vadd.f32 %v132, %v282
  %v619 = vadd.f32 %v135, %v288
  %v620 = vadd.f32 %v138, %v294
  %v621 = vadd.f32 %v141, %v300
  %v622 = vadd.f32 %v144, %v306
  %v623 = vadd.f32 %v147, %v312
  %v624 = vadd.f32 %v150, %v318
  %v625 = vadd.f32 %v153, %v324
  %v626 = vadd.f32 %v156, %v331
  %v627 = vadd.f32 %v159, %v337
  %v628 = vadd.f32 %v162, %v343
  %v629 = vadd.f32 %v165, %v349
  %v630 = vadd.f32 %v168, %v355
  %v631 = vadd.f32 %v171, %v361
  %v632 = vadd.f32 %v174, %v367
  %v633 = vadd.f32 %v177, %v373
  %v634 = vadd.f32 %v180, %v380
  %v635 = vadd.f32 %v183, %v386
  %v636 = vadd.f32 %v186, %v392
  %v637 = vadd.f32 %v189, %v398
  %v638 = vadd.f32 %v192, %v404
  %v639 = vadd.f32 %v195, %v410
  %v640 = vadd.f32 %v198, %v416
  %v641 = vadd.f32 %v201, %v422
  %v642 = vadd.f32 %v204, %v429
  %v643 = vadd.f32 %v207, %v435
  %v644 = vadd.f32 %v210, %v441
  %v645 = vadd.f32 %v213, %v447
  %v646 = vadd.f32 %v216, %v453
  %v647 = vadd.f32 %v219, %v459
  %v648 = vadd.f32 %v222, %v465
  %v649 = vadd.f32 %v225, %v471
  %v650 = vadd.f32 %v228, %v478
  %v651 = vadd.f32 %v231, %v484
  %v652 = vadd.f32 %v234, %v490
  %v653 = vadd.f32 %v237, %v496
  %v654 = vadd.f32 %v240, %v502
  %v655 = vadd.f32 %v243, %v508
  %v656 = vadd.f32 %v246, %v514
  %v657 = vadd.f32 %v249, %v520
  %v658 = vadd.f32 %v252, %v527
  %v659 = vadd.f32 %v255, %v533
  %v660 = vadd.f32 %v258, %v539
  %v661 = vadd.f32 %v261, %v545
  %v662 = vadd.f32 %v264, %v551
  %v663 = vadd.f32 %v267, %v557
  %v664 = vadd.f32 %v270, %v563
  %v665 = vadd.f32 %v273, %v569
  %714 = vset.pattern.permute.xlu0 0
  %715 = vperm.xlu0 %714, %v618
  %v716 = vpop.permute.xlu0 %715
  %717 = vset.pattern.permute.xlu0 0
  %718 = vperm.xlu0 %717, %v619
  %v719 = vpop.permute.xlu0 %718
  %720 = vset.pattern.permute.xlu0 0
  %721 = vperm.xlu0 %720, %v620
  %v722 = vpop.permute.xlu0 %721
  %723 = vset.pattern.permute.xlu0 0
  %724 = vperm.xlu0 %723, %v621
  %v725 = vpop.permute.xlu0 %724
  %726 = vset.pattern.permute.xlu0 0
  %727 = vperm.xlu0 %726, %v622
  %v728 = vpop.permute.xlu0 %727
  %729 = vset.pattern.permute.xlu0 0
  %730 = vperm.xlu0 %729, %v623
  %v731 = vpop.permute.xlu0 %730
  %732 = vset.pattern.permute.xlu0 0
  %733 = vperm.xlu0 %732, %v624
  %v734 = vpop.permute.xlu0 %733
  %735 = vset.pattern.permute.xlu0 0
  %736 = vperm.xlu0 %735, %v625
  %v737 = vpop.permute.xlu0 %736
  %738 = vset.pattern.permute.xlu0 0
  %739 = vperm.xlu0 %738, %v626
  %v740 = vpop.permute.xlu0 %739
  %741 = vset.pattern.permute.xlu0 0
  %742 = vperm.xlu0 %741, %v627
  %v743 = vpop.permute.xlu0 %742
  %744 = vset.pattern.permute.xlu0 0
  %745 = vperm.xlu0 %744, %v628
  %v746 = vpop.permute.xlu0 %745
  %747 = vset.pattern.permute.xlu0 0
  %748 = vperm.xlu0 %747, %v629
  %v749 = vpop.permute.xlu0 %748
  %750 = vset.pattern.permute.xlu0 0
  %751 = vperm.xlu0 %750, %v630
  %v752 = vpop.permute.xlu0 %751
  %753 = vset.pattern.permute.xlu0 0
  %754 = vperm.xlu0 %753, %v631
  %v755 = vpop.permute.xlu0 %754
  %756 = vset.pattern.permute.xlu0 0
  %757 = vperm.xlu0 %756, %v632
  %v758 = vpop.permute.xlu0 %757
  %759 = vset.pattern.permute.xlu0 0
  %760 = vperm.xlu0 %759, %v633
  %v761 = vpop.permute.xlu0 %760
  %762 = vset.pattern.permute.xlu0 0
  %763 = vperm.xlu0 %762, %v634
  %v764 = vpop.permute.xlu0 %763
  %765 = vset.pattern.permute.xlu0 0
  %766 = vperm.xlu0 %765, %v635
  %v767 = vpop.permute.xlu0 %766
  %768 = vset.pattern.permute.xlu0 0
  %769 = vperm.xlu0 %768, %v636
  %v770 = vpop.permute.xlu0 %769
  %771 = vset.pattern.permute.xlu0 0
  %772 = vperm.xlu0 %771, %v637
  %v773 = vpop.permute.xlu0 %772
  %774 = vset.pattern.permute.xlu0 0
  %775 = vperm.xlu0 %774, %v638
  %v776 = vpop.permute.xlu0 %775
  %777 = vset.pattern.permute.xlu0 0
  %778 = vperm.xlu0 %777, %v639
  %v779 = vpop.permute.xlu0 %778
  %780 = vset.pattern.permute.xlu0 0
  %781 = vperm.xlu0 %780, %v640
  %v782 = vpop.permute.xlu0 %781
  %783 = vset.pattern.permute.xlu0 0
  %784 = vperm.xlu0 %783, %v641
  %v785 = vpop.permute.xlu0 %784
  %786 = vset.pattern.permute.xlu0 0
  %787 = vperm.xlu0 %786, %v642
  %v788 = vpop.permute.xlu0 %787
  %789 = vset.pattern.permute.xlu0 0
  %790 = vperm.xlu0 %789, %v643
  %v791 = vpop.permute.xlu0 %790
  %792 = vset.pattern.permute.xlu0 0
  %793 = vperm.xlu0 %792, %v644
  %v794 = vpop.permute.xlu0 %793
  %795 = vset.pattern.permute.xlu0 0
  %796 = vperm.xlu0 %795, %v645
  %v797 = vpop.permute.xlu0 %796
  %798 = vset.pattern.permute.xlu0 0
  %799 = vperm.xlu0 %798, %v646
  %v800 = vpop.permute.xlu0 %799
  %801 = vset.pattern.permute.xlu0 0
  %802 = vperm.xlu0 %801, %v647
  %v803 = vpop.permute.xlu0 %802
  %804 = vset.pattern.permute.xlu0 0
  %805 = vperm.xlu0 %804, %v648
  %v806 = vpop.permute.xlu0 %805
  %807 = vset.pattern.permute.xlu0 0
  %808 = vperm.xlu0 %807, %v649
  %v809 = vpop.permute.xlu0 %808
  %810 = vset.pattern.permute.xlu0 0
  %811 = vperm.xlu0 %810, %v650
  %v812 = vpop.permute.xlu0 %811
  %813 = vset.pattern.permute.xlu0 0
  %814 = vperm.xlu0 %813, %v651
  %v815 = vpop.permute.xlu0 %814
  %816 = vset.pattern.permute.xlu0 0
  %817 = vperm.xlu0 %816, %v652
  %v818 = vpop.permute.xlu0 %817
  %819 = vset.pattern.permute.xlu0 0
  %820 = vperm.xlu0 %819, %v653
  %v821 = vpop.permute.xlu0 %820
  %822 = vset.pattern.permute.xlu0 0
  %823 = vperm.xlu0 %822, %v654
  %v824 = vpop.permute.xlu0 %823
  %825 = vset.pattern.permute.xlu0 0
  %826 = vperm.xlu0 %825, %v655
  %v827 = vpop.permute.xlu0 %826
  %828 = vset.pattern.permute.xlu0 0
  %829 = vperm.xlu0 %828, %v656
  %v830 = vpop.permute.xlu0 %829
  %831 = vset.pattern.permute.xlu0 0
  %832 = vperm.xlu0 %831, %v657
  %v833 = vpop.permute.xlu0 %832
  %834 = vset.pattern.permute.xlu0 0
  %835 = vperm.xlu0 %834, %v658
  %v836 = vpop.permute.xlu0 %835
  %837 = vset.pattern.permute.xlu0 0
  %838 = vperm.xlu0 %837, %v659
  %v839 = vpop.permute.xlu0 %838
  %840 = vset.pattern.permute.xlu0 0
  %841 = vperm.xlu0 %840, %v660
  %v842 = vpop.permute.xlu0 %841
  %843 = vset.pattern.permute.xlu0 0
  %844 = vperm.xlu0 %843, %v661
  %v845 = vpop.permute.xlu0 %844
  %846 = vset.pattern.permute.xlu0 0
  %847 = vperm.xlu0 %846, %v662
  %v848 = vpop.permute.xlu0 %847
  %849 = vset.pattern.permute.xlu0 0
  %850 = vperm.xlu0 %849, %v663
  %v851 = vpop.permute.xlu0 %850
  %852 = vset.pattern.permute.xlu0 0
  %853 = vperm.xlu0 %852, %v664
  %v854 = vpop.permute.xlu0 %853
  %855 = vset.pattern.permute.xlu0 0
  %856 = vperm.xlu0 %855, %v665
  %v857 = vpop.permute.xlu0 %856
  %v858 = vlaneseq
  %v859 = vand.u32 %v858, 127
  %v860 = vperm.slane %v716, %v859
  %v861 = vadd.s32 %v859, 4294967288
  %v862 = vperm.slane %v719, %v861
  %vm863 = vcmask 130112
  %v864 = vsel %vm863, %v862, %v860
  %v865 = vadd.s32 %v859, 4294967280
  %v866 = vperm.slane %v722, %v865
  %vm867 = vcmask 195712
  %v868 = vsel %vm867, %v866, %v864
  %v869 = vadd.s32 %v859, 4294967272
  %v870 = vperm.slane %v725, %v869
  %vm871 = vcmask 261312
  %v872 = vsel %vm871, %v870, %v868
  %v873 = vadd.s32 %v859, 4294967264
  %v874 = vperm.slane %v728, %v873
  %vm875 = vcmask 326912
  %v876 = vsel %vm875, %v874, %v872
  %v877 = vadd.s32 %v859, 4294967256
  %v878 = vperm.slane %v731, %v877
  %vm879 = vcmask 392512
  %v880 = vsel %vm879, %v878, %v876
  %v881 = vadd.s32 %v859, 4294967248
  %v882 = vperm.slane %v734, %v881
  %vm883 = vcmask 458112
  %v884 = vsel %vm883, %v882, %v880
  %v885 = vadd.s32 %v859, 4294967240
  %v886 = vperm.slane %v737, %v885
  %vm887 = vcmask 523712
  %v888 = vsel %vm887, %v886, %v884
  %v889 = vperm.slane %v740, %v859
  %v890 = vperm.slane %v743, %v861
  %v891 = vsel %vm863, %v890, %v889
  %v892 = vperm.slane %v746, %v865
  %v893 = vsel %vm867, %v892, %v891
  %v894 = vperm.slane %v749, %v869
  %v895 = vsel %vm871, %v894, %v893
  %v896 = vperm.slane %v752, %v873
  %v897 = vsel %vm875, %v896, %v895
  %v898 = vperm.slane %v755, %v877
  %v899 = vsel %vm879, %v898, %v897
  %v900 = vperm.slane %v758, %v881
  %v901 = vsel %vm883, %v900, %v899
  %v902 = vperm.slane %v761, %v885
  %v903 = vsel %vm887, %v902, %v901
  %v904 = vperm.slane %v764, %v859
  %v905 = vperm.slane %v767, %v861
  %v906 = vsel %vm863, %v905, %v904
  %v907 = vperm.slane %v770, %v865
  %v908 = vsel %vm867, %v907, %v906
  %v909 = vperm.slane %v773, %v869
  %v910 = vsel %vm871, %v909, %v908
  %v911 = vperm.slane %v776, %v873
  %v912 = vsel %vm875, %v911, %v910
  %v913 = vperm.slane %v779, %v877
  %v914 = vsel %vm879, %v913, %v912
  %v915 = vperm.slane %v782, %v881
  %v916 = vsel %vm883, %v915, %v914
  %v917 = vperm.slane %v785, %v885
  %v918 = vsel %vm887, %v917, %v916
  %v919 = vperm.slane %v788, %v859
  %v920 = vperm.slane %v791, %v861
  %v921 = vsel %vm863, %v920, %v919
  %v922 = vperm.slane %v794, %v865
  %v923 = vsel %vm867, %v922, %v921
  %v924 = vperm.slane %v797, %v869
  %v925 = vsel %vm871, %v924, %v923
  %v926 = vperm.slane %v800, %v873
  %v927 = vsel %vm875, %v926, %v925
  %v928 = vperm.slane %v803, %v877
  %v929 = vsel %vm879, %v928, %v927
  %v930 = vperm.slane %v806, %v881
  %v931 = vsel %vm883, %v930, %v929
  %v932 = vperm.slane %v809, %v885
  %v933 = vsel %vm887, %v932, %v931
  %v934 = vperm.slane %v812, %v859
  %v935 = vperm.slane %v815, %v861
  %v936 = vsel %vm863, %v935, %v934
  %v937 = vperm.slane %v818, %v865
  %v938 = vsel %vm867, %v937, %v936
  %v939 = vperm.slane %v821, %v869
  %v940 = vsel %vm871, %v939, %v938
  %v941 = vperm.slane %v824, %v873
  %v942 = vsel %vm875, %v941, %v940
  %v943 = vperm.slane %v827, %v877
  %v944 = vsel %vm879, %v943, %v942
  %v945 = vperm.slane %v830, %v881
  %v946 = vsel %vm883, %v945, %v944
  %v947 = vperm.slane %v833, %v885
  %v948 = vsel %vm887, %v947, %v946
  %v949 = vperm.slane %v836, %v859
  %v950 = vperm.slane %v839, %v861
  %v951 = vsel %vm863, %v950, %v949
  %v952 = vperm.slane %v842, %v865
  %v953 = vsel %vm867, %v952, %v951
  %v954 = vperm.slane %v845, %v869
  %v955 = vsel %vm871, %v954, %v953
  %v956 = vperm.slane %v848, %v873
  %v957 = vsel %vm875, %v956, %v955
  %v958 = vperm.slane %v851, %v877
  %v959 = vsel %vm879, %v958, %v957
  %v960 = vperm.slane %v854, %v881
  %v961 = vsel %vm883, %v960, %v959
  %v962 = vperm.slane %v857, %v885
  %v963 = vsel %vm887, %v962, %v961
  %vm964 = vcmask 1041409
  %v965 = vsel %vm964, %v903, %v888
  %vm966 = vcmask 1042434
  %v967 = vsel %vm966, %v918, %v965
  %vm968 = vcmask 1043459
  %v969 = vsel %vm968, %v933, %v967
  %vm970 = vcmask 1044484
  %v971 = vsel %vm970, %v948, %v969
  %vm972 = vcmask 1045509
  %v973 = vsel %vm972, %v963, %v971
  %vm975 = vcmask 521216
  %976 = vst.msk [vmem:[%s3] sm:$0x3f] %vm975, %v973
  // Predicated region
  $region14: #{tensor_linear_forward.1} parent=0 // pred_check
    _
  $region15: #{tensor_linear_forward.1} parent=0 // pred_check_branch
    %978 = sbr.rel (0) target = $region17
  $region16: #{tensor_linear_forward.1} parent=0 // pred_region
    _
  $region17: #{tensor_linear_forward.1} parent=0 // pred_fallthru
    _
  // Predicated region
  $region18: #{tensor_linear_forward.1} parent=0 // pred_check
    _
  $region19: #{tensor_linear_forward.1} parent=0 // pred_check_branch
    %980 = sbr.rel (0) target = $region21
  $region20: #{tensor_linear_forward.1} parent=0 // pred_region
    _
  $region21: #{tensor_linear_forward.1} parent=0 // pred_fallthru
    _

</llo_original>
